<compile_context>
chip_gen: v6e
topology: v6e:2x2x1
jax: 0.10.0
libtpu: 0.0.40
codegen_flags: <defaults>
</compile_context>

<pallas_src>
import functools

import jax
import jax.numpy as jnp
from jax.experimental import pallas as pl
from jax.experimental.pallas import tpu as pltpu


def _round_up(a, b):
    return -(-a // b) * b


def _tdeconv_kernel(x_ref, w_ref, e_ref, scale_ref, shift_ref, o_ref, *,
                    stride, tile_t, q_plan, c_out_p, multi_tile):
    # x_ref     : (1, C_in_p, L_x)            bf16  raw (padded) input, one batch element
    # w_ref     : (S*K_max, C_out_p, C_in_p)  bf16  per-(phase, tap-slot) weight matrices
    # e_ref     : (S, tile_t, tile_t*S)       bf16  0/1 phase-interleave (spread) matrices
    # scale_ref : (C_out_p, 1)                f32   gamma / sqrt(var + eps)
    # shift_ref : (C_out_p, 1)                f32   beta + (bias - mean) * scale
    # o_ref     : (1, C_out_p, tile_t*S)      natural-order (interleaved) output tile
    if multi_tile:
        base = pl.multiple_of(pl.program_id(1) * tile_t, tile_t)
    else:
        base = 0  # single L tile -> fully static slicing

    # Hoisted epilogue broadcasts (reused by every phase).
    scale_b = jnp.broadcast_to(scale_ref[...], (c_out_p, tile_t))
    shift_b = jnp.broadcast_to(shift_ref[...], (c_out_p, tile_t))

    # Per-phase accumulation.  Each distinct x offset is loaded from the ref
    # exactly once per tile (no materialized window, no concatenation).
    accs = [None] * stride
    for off, users in q_plan:                      # static Python loop
        xq = x_ref[0, :, pl.ds(base + off, tile_t)]          # (C_in_p, tile_t) bf16
        for r, slot in users:
            d = jnp.dot(w_ref[slot], xq, preferred_element_type=jnp.float32)
            accs[r] = d if accs[r] is None else accs[r] + d

    out_acc = None
    for r in range(stride):                        # static Python loop over phases
        acc = accs[r]
        if acc is None:                            # phase with no taps: pure bias/BN shift
            acc = jnp.zeros((c_out_p, tile_t), jnp.float32)
        y = jnp.maximum(acc * scale_b + shift_b, 0.0)         # bias+BN fold, ReLU (f32)
        if stride == 1:
            out_acc = y
        else:
            # Exact in-kernel interleave on the MXU: 0/1 spread matrix places phase-r
            # column t at output column t*stride + r (lane-dense, no HBM transpose).
            yb = y.astype(jnp.bfloat16)
            sp = jnp.dot(yb, e_ref[r], preferred_element_type=jnp.float32)
            out_acc = sp if out_acc is None else out_acc + sp
    o_ref[0] = out_acc.astype(o_ref.dtype)


def temporal_deconv_block(x, weight, bias, gamma, beta, running_mean, running_var,
                          *, stride, padding, dilation, eps=1e-5,
                          out_dtype=jnp.bfloat16):
    """Forward pass of TemporalDeconvBlock (eval mode).

    x: (N, C_in, L_in); weight: (C_in, C_out, K); returns (N, C_out, L_out) in `out_dtype`.
    """
    n, c_in, l_in = x.shape
    w_cin, c_out, k = weight.shape
    assert w_cin == c_in
    s, d, p = int(stride), int(dilation), int(padding)
    l_out = (l_in - 1) * s - 2 * p + d * (k - 1) + 1
    assert l_out >= 1, "invalid ConvTranspose1d geometry"

    # ---- static polyphase decomposition (pure Python, resolved at trace time) ----
    # out[t] with t = T*s + r gathers taps k with (r + p - k*d) % s == 0 from x[T + q_k],
    # q_k = (r + p - k*d) // s.
    taps = []
    for r in range(s):
        taps.append([(kk, (r + p - kk * d) // s)
                     for kk in range(k) if (r + p - kk * d) % s == 0])
    k_max = max(1, max(len(t) for t in taps))
    q_all = [q for t in taps for _, q in t] or [0]
    q_min, q_max = min(q_all), max(q_all)

    # ---- tiling: interleaved output tiles are (C_out_p, tile*s) and lane-dense ----
    t_max = -(-l_out // s)                        # per-phase output length
    if t_max >= 128:
        tile = min((256, 128), key=lambda c: (_round_up(t_max, c), -c))
        t_pad = _round_up(t_max, tile)
    else:
        # tiny problem: single tile, but keep stored lane width (tile*s) >= 128
        tile = t_pad = _round_up(max(t_max, -(-128 // s)), 8)
    c_in_p = _round_up(c_in, 16)                  # bf16 sublane pack (16, 128)
    c_out_p = _round_up(c_out, 16)

    pad_l = max(0, -q_min)                        # small halo pads on raw x
    pad_r = max(0, t_pad + q_max - l_in)
    l_x = pad_l + l_in + pad_r

    # distinct x offsets -> the (phase, weight-slot) pairs that consume them
    q_users = {}
    for r in range(s):
        for jj, (kk, q) in enumerate(taps[r]):
            q_users.setdefault(q, []).append((r, r * k_max + jj))
    q_plan = tuple((q + pad_l, tuple(u)) for q, u in sorted(q_users.items()))

    # ---- operand prep: bf16 data path, f32 epilogue params, bias folded into BN shift ----
    x_p = jnp.pad(x, ((0, 0), (0, c_in_p - c_in), (pad_l, pad_r))).astype(jnp.bfloat16)

    slabs = []
    for r in range(s):
        for jj in range(k_max):
            if jj < len(taps[r]):
                wk = weight[:, :, taps[r][jj][0]].T                  # (C_out, C_in)
            else:
                wk = jnp.zeros((c_out, c_in), weight.dtype)          # unused dummy slot
            slabs.append(jnp.pad(wk, ((0, c_out_p - c_out), (0, c_in_p - c_in))))
    w_all = jnp.stack(slabs, 0).astype(jnp.bfloat16)                 # (s*k_max, C_out_p, C_in_p)

    # 0/1 spread matrices: E[r, t, t*s + r] = 1 (exact in bf16)
    t_idx = jnp.arange(tile)[:, None]
    col = jnp.arange(tile * s)[None, :]
    e_all = jnp.stack([(col == t_idx * s + r) for r in range(s)], 0).astype(jnp.bfloat16)

    scale = (gamma / jnp.sqrt(running_var + eps)).astype(jnp.float32)
    shift = (beta + (bias - running_mean) * scale).astype(jnp.float32)
    scale_col = jnp.pad(scale, (0, c_out_p - c_out)).reshape(c_out_p, 1)
    shift_col = jnp.pad(shift, (0, c_out_p - c_out)).reshape(c_out_p, 1)

    grid = (n, t_pad // tile)
    multi_tile = t_pad > tile
    kernel = functools.partial(_tdeconv_kernel, stride=s, tile_t=tile,
                               q_plan=q_plan, c_out_p=c_out_p, multi_tile=multi_tile)

    # ---- VMEM budget + generation-aware limit ----
    x_blk = c_in_p * l_x * 2
    out_blk = c_out_p * tile * s * jnp.dtype(out_dtype).itemsize
    const_b = w_all.size * 2 + e_all.size * 2 + (scale_col.size + shift_col.size) * 4
    need = 2 * x_blk + 2 * out_blk + 2 * const_b + (4 << 20)
    try:
        cap = int(getattr(pltpu.get_tpu_info(), "vmem_capacity_bytes", 128 << 20))
    except Exception:  # fall back if the query is unavailable
        cap = 128 << 20
    vmem_limit = int(min(max(need, 1 << 20), (cap * 3) // 4))

    taps_total = sum(len(t) for t in taps)
    flops = 2 * n * t_pad * taps_total * c_out_p * c_in_p
    if s > 1:
        flops += 2 * n * t_pad * s * s * c_out_p * tile            # interleave spread dots
    bytes_accessed = int(x_p.size * 2 + w_all.size * 2 + e_all.size * 2
                         + (scale_col.size + shift_col.size) * 4
                         + n * c_out_p * t_pad * s * jnp.dtype(out_dtype).itemsize)

    # Megacore: shard batch when possible so each core keeps its x block resident
    # across its L tiles (L axis stays "arbitrary").
    dims = ("parallel", "arbitrary") if n > 1 else ("arbitrary", "parallel")

    out_full = pl.pallas_call(
        kernel,
        out_shape=jax.ShapeDtypeStruct((n, c_out_p, t_pad * s), out_dtype),
        grid_spec=pltpu.PrefetchScalarGridSpec(
            num_scalar_prefetch=0,
            grid=grid,
            in_specs=[
                pl.BlockSpec((1, c_in_p, l_x), lambda i, j: (i, 0, 0)),          # x: resident over L tiles
                pl.BlockSpec((s * k_max, c_out_p, c_in_p), lambda i, j: (0, 0, 0)),  # weights (constant)
                pl.BlockSpec((s, tile, tile * s), lambda i, j: (0, 0, 0)),       # spread mats (constant)
                pl.BlockSpec((c_out_p, 1), lambda i, j: (0, 0)),                 # scale
                pl.BlockSpec((c_out_p, 1), lambda i, j: (0, 0)),                 # shift (bias folded)
            ],
            out_specs=pl.BlockSpec((1, c_out_p, tile * s), lambda i, j: (i, 0, j)),
        ),
        compiler_params=pltpu.CompilerParams(
            dimension_semantics=dims, vmem_limit_bytes=vmem_limit),
        cost_estimate=pl.CostEstimate(flops=flops, transcendentals=0,
                                      bytes_accessed=bytes_accessed),
    )(x_p, w_all, e_all, scale_col, shift_col)

    # Output is already in natural (N, C_out, L) order -> only drop padding (no transpose).
    return out_full[:, :c_out, :l_out]


def _reference(x, weight, bias, gamma, beta, running_mean, running_var,
               *, stride, padding, dilation, eps=1e-5):
    """Pure-JAX reference: direct ConvTranspose1d scatter + eval BN + ReLU (f32 path,
    x/weight rounded through bf16 to match the kernel's bf16 data path)."""
    n, c_in, l_in = x.shape
    _, c_out, k = weight.shape
    l_out = (l_in - 1) * stride - 2 * padding + dilation * (k - 1) + 1
    xq = x.astype(jnp.bfloat16).astype(jnp.float32)
    wq = weight.astype(jnp.bfloat16).astype(jnp.float32)
    out = jnp.zeros((n, c_out, l_out), jnp.float32)
    for kk in range(k):
        contrib = jnp.einsum("ncl,co->nol", xq, wq[:, :, kk])
        pos = jnp.arange(l_in) * stride - padding + kk * dilation
        valid = (pos >= 0) & (pos < l_out)
        contrib = jnp.where(valid[None, None, :], contrib, 0.0)
        out = out.at[:, :, jnp.clip(pos, 0, l_out - 1)].add(contrib)
    out = out + bias[None, :, None]
    scale = gamma / jnp.sqrt(running_var + eps)
    out = (out - running_mean[None, :, None]) * scale[None, :, None] + beta[None, :, None]
    return jnp.maximum(out, 0.0)


def _run_case(key, *, n, c_in, c_out, l_in, k, stride, dilation, padding):
    kx, kw, kb, kg, kbe, km, kv = jax.random.split(key, 7)
    x = jax.random.normal(kx, (n, c_in, l_in), jnp.float32)
    weight = 0.1 * jax.random.normal(kw, (c_in, c_out, k), jnp.float32)
    bias = 0.1 * jax.random.normal(kb, (c_out,), jnp.float32)
    gamma = 1.0 + 0.1 * jax.random.normal(kg, (c_out,), jnp.float32)
    beta = 0.1 * jax.random.normal(kbe, (c_out,), jnp.float32)
    rmean = 0.1 * jax.random.normal(km, (c_out,), jnp.float32)
    rvar = 1.0 + 0.1 * jax.random.uniform(kv, (c_out,), jnp.float32)

    out = temporal_deconv_block(x, weight, bias, gamma, beta, rmean, rvar,
                                stride=stride, padding=padding, dilation=dilation)
    out = jax.block_until_ready(out)

    ref = _reference(x, weight, bias, gamma, beta, rmean, rvar,
                     stride=stride, padding=padding, dilation=dilation)
    l_out = (l_in - 1) * stride - 2 * padding + dilation * (k - 1) + 1
    assert out.shape == (n, c_out, l_out), out.shape
    # Output is stored in bf16 -> allow half-ulp bf16 rounding of values O(1).
    err = float(jnp.abs(out.astype(jnp.float32) - ref).max())
    assert err < 2e-2, err


if __name__ == "__main__":
    key = jax.random.PRNGKey(0)
    k1, k2 = jax.random.split(key)
    # Small config consistent with the module (batch=2, C_in=4 -> C_out=8, L_in=16).
    _run_case(k1, n=2, c_in=4, c_out=8, l_in=16, k=3, stride=2, dilation=1, padding=1)
    # A second geometry (stride=3, dilation=2, K=5) exercising the general polyphase path.
    _run_case(k2, n=2, c_in=4, c_out=8, l_in=16, k=5, stride=3, dilation=2, padding=2)
    print("KERNEL_OK")
</pallas_src>

<mosaic_0001>
module attributes {stable_mosaic.version = 11 : i64} {
  func.func @_tdeconv_kernel(%arg0: i32, %arg1: i32, %arg2: memref<1x16x65xbf16, #tpu.memory_space<vmem>>, %arg3: memref<4x16x16xbf16, #tpu.memory_space<vmem>>, %arg4: memref<2x64x128xbf16, #tpu.memory_space<vmem>>, %arg5: memref<16x1xf32, #tpu.memory_space<vmem>>, %arg6: memref<16x1xf32, #tpu.memory_space<vmem>>, %arg7: memref<1x16x128xbf16, #tpu.memory_space<vmem>>) attributes {dimension_semantics = [#tpu.dimension_semantics<parallel>, #tpu.dimension_semantics<arbitrary>], iteration_bounds = array<i64: 2, 1>, scalar_prefetch = 0 : i64, scratch_operands = 0 : i64, tpu.core_type = #tpu.core_type<tc>, window_params = [{transform_indices = @transform_0, window_bounds = array<i64: 1, 16, 65>}, {pipeline_mode = #tpu.pipeline_mode<synchronous>, transform_indices = @transform_1, window_bounds = array<i64: 4, 16, 16>}, {pipeline_mode = #tpu.pipeline_mode<synchronous>, transform_indices = @transform_2, window_bounds = array<i64: 2, 64, 128>}, {pipeline_mode = #tpu.pipeline_mode<synchronous>, transform_indices = @transform_3, window_bounds = array<i64: 16, 1>}, {pipeline_mode = #tpu.pipeline_mode<synchronous>, transform_indices = @transform_4, window_bounds = array<i64: 16, 1>}, {transform_indices = @transform_5, window_bounds = array<i64: 1, 16, 128>}]} {
    %c0 = arith.constant 0 : index
    %c0_0 = arith.constant 0 : index
    %0 = vector.load %arg5[%c0, %c0_0] : memref<16x1xf32, #tpu.memory_space<vmem>>, vector<16x1xf32>
    %1 = vector.shape_cast %0 : vector<16x1xf32> to vector<16x1xf32>
    %2 = vector.broadcast %1 : vector<16x1xf32> to vector<16x64xf32>
    %c0_1 = arith.constant 0 : index
    %c0_2 = arith.constant 0 : index
    %3 = vector.load %arg6[%c0_1, %c0_2] : memref<16x1xf32, #tpu.memory_space<vmem>>, vector<16x1xf32>
    %4 = vector.shape_cast %3 : vector<16x1xf32> to vector<16x1xf32>
    %5 = vector.broadcast %4 : vector<16x1xf32> to vector<16x64xf32>
    %c0_3 = arith.constant 0 : index
    %c0_4 = arith.constant 0 : index
    %c0_5 = arith.constant 0 : index
    %6 = vector.load %arg2[%c0_3, %c0_4, %c0_5] : memref<1x16x65xbf16, #tpu.memory_space<vmem>>, vector<1x16x64xbf16>
    %7 = vector.shape_cast %6 : vector<1x16x64xbf16> to vector<16x64xbf16>
    %c0_6 = arith.constant 0 : index
    %c0_7 = arith.constant 0 : index
    %c0_8 = arith.constant 0 : index
    %8 = vector.load %arg3[%c0_6, %c0_7, %c0_8] : memref<4x16x16xbf16, #tpu.memory_space<vmem>>, vector<1x16x16xbf16>
    %9 = vector.shape_cast %8 : vector<1x16x16xbf16> to vector<16x16xbf16>
    %cst = arith.constant dense<0.000000e+00> : vector<16x64xf32>
    %10 = tpu.matmul %9, %7, %cst {dimension_numbers = #tpu.dot_dimension_numbers<[1], [0], [0], [1], [0, 0, 1, 1], [], []>} : vector<16x16xbf16>, vector<16x64xbf16>, vector<16x64xf32> -> vector<16x64xf32>
    %c3 = arith.constant 3 : index
    %c0_9 = arith.constant 0 : index
    %c0_10 = arith.constant 0 : index
    %11 = vector.load %arg3[%c3, %c0_9, %c0_10] : memref<4x16x16xbf16, #tpu.memory_space<vmem>>, vector<1x16x16xbf16>
    %12 = vector.shape_cast %11 : vector<1x16x16xbf16> to vector<16x16xbf16>
    %cst_11 = arith.constant dense<0.000000e+00> : vector<16x64xf32>
    %13 = tpu.matmul %12, %7, %cst_11 {dimension_numbers = #tpu.dot_dimension_numbers<[1], [0], [0], [1], [0, 0, 1, 1], [], []>} : vector<16x16xbf16>, vector<16x64xbf16>, vector<16x64xf32> -> vector<16x64xf32>
    %c0_12 = arith.constant 0 : index
    %c0_13 = arith.constant 0 : index
    %c1 = arith.constant 1 : index
    %14 = vector.load %arg2[%c0_12, %c0_13, %c1] : memref<1x16x65xbf16, #tpu.memory_space<vmem>>, vector<1x16x64xbf16>
    %15 = vector.shape_cast %14 : vector<1x16x64xbf16> to vector<16x64xbf16>
    %c2 = arith.constant 2 : index
    %c0_14 = arith.constant 0 : index
    %c0_15 = arith.constant 0 : index
    %16 = vector.load %arg3[%c2, %c0_14, %c0_15] : memref<4x16x16xbf16, #tpu.memory_space<vmem>>, vector<1x16x16xbf16>
    %17 = vector.shape_cast %16 : vector<1x16x16xbf16> to vector<16x16xbf16>
    %cst_16 = arith.constant dense<0.000000e+00> : vector<16x64xf32>
    %18 = tpu.matmul %17, %15, %cst_16 {dimension_numbers = #tpu.dot_dimension_numbers<[1], [0], [0], [1], [0, 0, 1, 1], [], []>} : vector<16x16xbf16>, vector<16x64xbf16>, vector<16x64xf32> -> vector<16x64xf32>
    %19 = arith.addf %13, %18 : vector<16x64xf32>
    %20 = arith.mulf %10, %2 : vector<16x64xf32>
    %21 = arith.addf %20, %5 : vector<16x64xf32>
    %cst_17 = arith.constant 0.000000e+00 : f32
    %22 = vector.broadcast %cst_17 : f32 to vector<16x64xf32>
    %23 = arith.maximumf %21, %22 : vector<16x64xf32>
    %24 = arith.truncf %23 : vector<16x64xf32> to vector<16x64xbf16>
    %c0_18 = arith.constant 0 : index
    %c0_19 = arith.constant 0 : index
    %c0_20 = arith.constant 0 : index
    %25 = vector.load %arg4[%c0_18, %c0_19, %c0_20] : memref<2x64x128xbf16, #tpu.memory_space<vmem>>, vector<1x64x128xbf16>
    %26 = vector.shape_cast %25 : vector<1x64x128xbf16> to vector<64x128xbf16>
    %cst_21 = arith.constant dense<0.000000e+00> : vector<16x128xf32>
    %27 = tpu.matmul %24, %26, %cst_21 {dimension_numbers = #tpu.dot_dimension_numbers<[1], [0], [0], [1], [0, 0, 1, 1], [], []>} : vector<16x64xbf16>, vector<64x128xbf16>, vector<16x128xf32> -> vector<16x128xf32>
    %28 = arith.mulf %19, %2 : vector<16x64xf32>
    %29 = arith.addf %28, %5 : vector<16x64xf32>
    %cst_22 = arith.constant 0.000000e+00 : f32
    %30 = vector.broadcast %cst_22 : f32 to vector<16x64xf32>
    %31 = arith.maximumf %29, %30 : vector<16x64xf32>
    %32 = arith.truncf %31 : vector<16x64xf32> to vector<16x64xbf16>
    %c1_23 = arith.constant 1 : index
    %c0_24 = arith.constant 0 : index
    %c0_25 = arith.constant 0 : index
    %33 = vector.load %arg4[%c1_23, %c0_24, %c0_25] : memref<2x64x128xbf16, #tpu.memory_space<vmem>>, vector<1x64x128xbf16>
    %34 = vector.shape_cast %33 : vector<1x64x128xbf16> to vector<64x128xbf16>
    %cst_26 = arith.constant dense<0.000000e+00> : vector<16x128xf32>
    %35 = tpu.matmul %32, %34, %cst_26 {dimension_numbers = #tpu.dot_dimension_numbers<[1], [0], [0], [1], [0, 0, 1, 1], [], []>} : vector<16x64xbf16>, vector<64x128xbf16>, vector<16x128xf32> -> vector<16x128xf32>
    %36 = arith.addf %27, %35 : vector<16x128xf32>
    %37 = arith.truncf %36 : vector<16x128xf32> to vector<16x128xbf16>
    %c0_27 = arith.constant 0 : index
    %c0_28 = arith.constant 0 : index
    %c0_29 = arith.constant 0 : index
    %38 = vector.load %arg7[%c0_27, %c0_28, %c0_29] : memref<1x16x128xbf16, #tpu.memory_space<vmem>>, vector<1x16x128xbf16>
    %39 = vector.shape_cast %38 : vector<1x16x128xbf16> to vector<16x128xbf16>
    %40 = vector.shape_cast %37 : vector<16x128xbf16> to vector<1x16x128xbf16>
    tpu.vector_store %arg7[%c0_27, %c0_28, %c0_29], %40 {strides = array<i32>} : memref<1x16x128xbf16, #tpu.memory_space<vmem>>, vector<1x16x128xbf16>,
    return
  }
  func.func @transform_0(%arg0: i32, %arg1: i32) -> (i32, i32, i32) {
    %c0_i32 = arith.constant 0 : i32
    %c0_i32_0 = arith.constant 0 : i32
    %c0_i32_1 = arith.constant 0 : i32
    return %arg0, %c0_i32, %c0_i32_0 : i32, i32, i32
  }
  func.func @transform_1(%arg0: i32, %arg1: i32) -> (i32, i32, i32) {
    %c0_i32 = arith.constant 0 : i32
    %c0_i32_0 = arith.constant 0 : i32
    %c0_i32_1 = arith.constant 0 : i32
    %c0_i32_2 = arith.constant 0 : i32
    return %c0_i32, %c0_i32_0, %c0_i32_1 : i32, i32, i32
  }
  func.func @transform_2(%arg0: i32, %arg1: i32) -> (i32, i32, i32) {
    %c0_i32 = arith.constant 0 : i32
    %c0_i32_0 = arith.constant 0 : i32
    %c0_i32_1 = arith.constant 0 : i32
    %c0_i32_2 = arith.constant 0 : i32
    return %c0_i32, %c0_i32_0, %c0_i32_1 : i32, i32, i32
  }
  func.func @transform_3(%arg0: i32, %arg1: i32) -> (i32, i32) {
    %c0_i32 = arith.constant 0 : i32
    %c0_i32_0 = arith.constant 0 : i32
    %c0_i32_1 = arith.constant 0 : i32
    return %c0_i32, %c0_i32_0 : i32, i32
  }
  func.func @transform_4(%arg0: i32, %arg1: i32) -> (i32, i32) {
    %c0_i32 = arith.constant 0 : i32
    %c0_i32_0 = arith.constant 0 : i32
    %c0_i32_1 = arith.constant 0 : i32
    return %c0_i32, %c0_i32_0 : i32, i32
  }
  func.func @transform_5(%arg0: i32, %arg1: i32) -> (i32, i32, i32) {
    %c0_i32 = arith.constant 0 : i32
    %c0_i32_0 = arith.constant 0 : i32
    return %arg0, %c0_i32, %arg1 : i32, i32, i32
  }
}

</mosaic_0001>

<llo_original>
// kernel: tpu_custom_call.1
$region0: #{tpu_custom_call.1}
  #allocation0 [shape = 'u32[]', space=smem, size = 0x4, offset = 0x4, fixed_abs, tag = 'smem constant byte address 0x4 - core index']
  #allocation1 [shape = 'u32[144,128]{1,0:T(1,128)}', space=vmem, size = 0x12000, scoped, tag = 'internal scratch']
  %s0 = inlined_call_operand.hbm [shape: bf16[2,16,65], index: 0, kind: input, shape index: {}]
  %s1 = inlined_call_operand.vmem [shape: bf16[4,16,16], index: 1, kind: input, shape index: {}]
  %s2 = inlined_call_operand.hbm [shape: bf16[2,64,128], index: 2, kind: input, shape index: {}]
  %s3 = inlined_call_operand.vmem [shape: f32[16,1], index: 3, kind: input, shape index: {}]
  %s4 = inlined_call_operand.vmem [shape: f32[16,1], index: 4, kind: input, shape index: {}]
  %s5 = inlined_call_operand.hbm [shape: bf16[2,16,128], index: 5, kind: output, shape index: {}]
  %s6 = sld [smem:[#allocation0]]
  $region61: #{tpu_custom_call.1} parent=0
    _
  %s8 = ssub.s32 1, %s6
  %s9 = scalar_select 0, %s8, %s6
  $region1: #{tpu_custom_call.1} parent=0
    #allocation2 [shape = 'u8[8192]{0}', space=vmem, size = 0x2000, scoped, tag = 'input window, operand 0']
    #allocation3 [shape = 's32[2]{0}', space=sflag, size = 0x8, scoped, tag = 'scoped memory for tpu_custom_call.1']
    #allocation4 [shape = 's32[2]{0}', space=sflag, size = 0x8, scoped, tag = 'scoped memory for tpu_custom_call.1']
    #allocation5 [shape = 'u8[32768]{0}', space=vmem, size = 0x8000, scoped, tag = 'input window, operand 2, single buffered']
    #allocation6 [shape = 's32[1]{0}', space=sflag, size = 0x4, scoped, tag = 'scoped memory for tpu_custom_call.1']
    #allocation7 [shape = 'u8[8192]{0}', space=vmem, size = 0x2000, scoped, tag = 'output window, operand 0']
    %10 = vsyncpa [#allocation3], 0
    %s11 = scalar_lea.sflag [#allocation3], 1
    %12 = vsyncpa %s11, 0
    %13 = vsyncpa [#allocation6], 0
    %14 = vsyncpa [#allocation4], 0
    %s15 = scalar_lea.sflag [#allocation4], 1
    %16 = vsyncpa %s15, 0
    loop: start=0, step=1, limit=4
    $region2: #{tpu_custom_call.1} parent=1 // loop_pre_header
      _
    $region3: #{tpu_custom_call.1} parent=1 // loop_header
      %s18 = sphi 0, %s22
      %p19 = scmp.ge.s32.totalorder %s18, 4
      %s25 = sphi 0, %s37
      %s26 = sphi 0, %s33
      %s27 = sphi 0, %s25
      %s28 = sphi 0, %s26
      %s29 = sphi 0, %s27
      %s30 = sphi 0, %s28
      %s40 = sphi 0, %s42
      %s43 = sphi 0, %s40
      %s44 = sphi 0, %s43
      %s60 = sphi 0, %s44
      %s64 = sphi 0, %s64
      %s66 = sphi 0, %s64
      %s67 = sphi 0, %s66
      %s81 = sphi 0, %s67
      %s85 = sphi 0, %s85
      %s87 = sphi 0, %s85
      %s88 = sphi 0, %s87
      %s102 = sphi 0, %s88
      %s106 = sphi 0, %s106
      %s108 = sphi 0, %s106
      %s109 = sphi 0, %s108
      %s123 = sphi 0, %s109
      %s127 = sphi 0, %s127
      %s129 = sphi 0, %s127
      %s130 = sphi 0, %s129
      %s144 = sphi 0, %s130
      %s152 = sphi 0, %s154
      %s155 = sphi 0, %s152
      %s156 = sphi 0, %s155
      %s172 = sphi 0, %s156
    $region4: #{tpu_custom_call.1} parent=1 // loop_header_branch
      %21 = sbr.rel (%p19) target = $region8
    $region5: #{tpu_custom_call.1} parent=1 // loop_body
      %s23 = ssub.s32 %s18, 1
      %s24 = ssub.s32 %s18, 2
      %s31 = sadd.s32 1, %s26
      %p32 = scmp.ge.s32.totalorder %s31, 1
      %s33 = scalar_select %p32, 0, %s31
      %s34 = sadd.s32 1, %s25
      %s35 = scalar_select %p32, %s34, %s25
      %p36 = scmp.ge.s32.totalorder %s35, 2
      %s37 = scalar_select %p36, 0, %s35
      %s38 = ssub.s32 %s25, %s37
      %p39 = scmp.eq.s32.totalorder %s38, 0
      %s41 = sadd.s32 %s40, 1
      %s42 = scalar_select %p39, %s40, %s41
      %p45 = pneg %p39
      %p46 = scmp.eq.s32.totalorder %s18, 1
      %p47 = por %p45, %p46
      %p48 = scmp.ne.s32.totalorder %s40, %s43
      %p49 = scmp.eq.s32.totalorder %s18, 0
      %p50 = por %p48, %p49
      %p51 = scmp.ne.s32.totalorder %s40, %s43
      %p52 = scmp.eq.s32.totalorder %s23, 1
      %p53 = por %p51, %p52
      %p54 = scmp.ne.s32.totalorder %s43, %s44
      %p55 = scmp.eq.s32.totalorder %s23, 0
      %p56 = por %p54, %p55
      %p57 = scmp.ne.s32.totalorder %s43, %s44
      %p58 = scmp.eq.s32.totalorder %s24, 1
      %p59 = por %p57, %p58
      %p61 = scmp.ne.s32.totalorder %s44, %s60
      %p62 = scmp.eq.s32.totalorder %s24, 0
      %p63 = por %p61, %p62
      %s65 = sadd.s32 %s64, 1
      %p68 = scmp.eq.s32.totalorder %s18, 1
      %p69 = scmp.ne.s32.totalorder %s64, %s66
      %p70 = scmp.eq.s32.totalorder %s18, 0
      %p71 = por %p69, %p70
      %p72 = scmp.ne.s32.totalorder %s64, %s66
      %p73 = scmp.eq.s32.totalorder %s23, 1
      %p74 = por %p72, %p73
      %p75 = scmp.ne.s32.totalorder %s66, %s67
      %p76 = scmp.eq.s32.totalorder %s23, 0
      %p77 = por %p75, %p76
      %p78 = scmp.ne.s32.totalorder %s66, %s67
      %p79 = scmp.eq.s32.totalorder %s24, 1
      %p80 = por %p78, %p79
      %p82 = scmp.ne.s32.totalorder %s67, %s81
      %p83 = scmp.eq.s32.totalorder %s24, 0
      %p84 = por %p82, %p83
      %s86 = sadd.s32 %s85, 1
      %p89 = scmp.eq.s32.totalorder %s18, 1
      %p90 = scmp.ne.s32.totalorder %s85, %s87
      %p91 = scmp.eq.s32.totalorder %s18, 0
      %p92 = por %p90, %p91
      %p93 = scmp.ne.s32.totalorder %s85, %s87
      %p94 = scmp.eq.s32.totalorder %s23, 1
      %p95 = por %p93, %p94
      %p96 = scmp.ne.s32.totalorder %s87, %s88
      %p97 = scmp.eq.s32.totalorder %s23, 0
      %p98 = por %p96, %p97
      %p99 = scmp.ne.s32.totalorder %s87, %s88
      %p100 = scmp.eq.s32.totalorder %s24, 1
      %p101 = por %p99, %p100
      %p103 = scmp.ne.s32.totalorder %s88, %s102
      %p104 = scmp.eq.s32.totalorder %s24, 0
      %p105 = por %p103, %p104
      %s107 = sadd.s32 %s106, 1
      %p110 = scmp.eq.s32.totalorder %s18, 1
      %p111 = scmp.ne.s32.totalorder %s106, %s108
      %p112 = scmp.eq.s32.totalorder %s18, 0
      %p113 = por %p111, %p112
      %p114 = scmp.ne.s32.totalorder %s106, %s108
      %p115 = scmp.eq.s32.totalorder %s23, 1
      %p116 = por %p114, %p115
      %p117 = scmp.ne.s32.totalorder %s108, %s109
      %p118 = scmp.eq.s32.totalorder %s23, 0
      %p119 = por %p117, %p118
      %p120 = scmp.ne.s32.totalorder %s108, %s109
      %p121 = scmp.eq.s32.totalorder %s24, 1
      %p122 = por %p120, %p121
      %p124 = scmp.ne.s32.totalorder %s109, %s123
      %p125 = scmp.eq.s32.totalorder %s24, 0
      %p126 = por %p124, %p125
      %s128 = sadd.s32 %s127, 1
      %p131 = scmp.eq.s32.totalorder %s18, 1
      %p132 = scmp.ne.s32.totalorder %s127, %s129
      %p133 = scmp.eq.s32.totalorder %s18, 0
      %p134 = por %p132, %p133
      %p135 = scmp.ne.s32.totalorder %s127, %s129
      %p136 = scmp.eq.s32.totalorder %s23, 1
      %p137 = por %p135, %p136
      %p138 = scmp.ne.s32.totalorder %s129, %s130
      %p139 = scmp.eq.s32.totalorder %s23, 0
      %p140 = por %p138, %p139
      %p141 = scmp.ne.s32.totalorder %s129, %s130
      %p142 = scmp.eq.s32.totalorder %s24, 1
      %p143 = por %p141, %p142
      %p145 = scmp.ne.s32.totalorder %s130, %s144
      %p146 = scmp.eq.s32.totalorder %s24, 0
      %p147 = por %p145, %p146
      %s148 = ssub.s32 %s25, %s37
      %s149 = ssub.s32 %s26, %s33
      %s150 = sor.u32 %s148, %s149
      %p151 = scmp.eq.s32.totalorder %s150, 0
      %s153 = sadd.s32 %s152, 1
      %s154 = scalar_select %p151, %s152, %s153
      %p157 = pneg %p151
      %p158 = scmp.eq.s32.totalorder %s18, 1
      %p159 = por %p157, %p158
      %p160 = scmp.ne.s32.totalorder %s152, %s155
      %p161 = scmp.eq.s32.totalorder %s18, 0
      %p162 = por %p160, %p161
      %p163 = scmp.ne.s32.totalorder %s152, %s155
      %p164 = scmp.eq.s32.totalorder %s23, 1
      %p165 = por %p163, %p164
      %p166 = scmp.ne.s32.totalorder %s155, %s156
      %p167 = scmp.eq.s32.totalorder %s23, 0
      %p168 = por %p166, %p167
      %p169 = scmp.ne.s32.totalorder %s155, %s156
      %p170 = scmp.eq.s32.totalorder %s24, 1
      %p171 = por %p169, %p170
      %p173 = scmp.ne.s32.totalorder %s156, %s172
      %p174 = scmp.eq.s32.totalorder %s24, 0
      %p175 = por %p173, %p174
      %p176 = scmp.le.s32.totalorder 1, %s18
      %p177 = scmp.lt.s32.totalorder %s18, 3
      %p178 = pnand %p176, %p177
      %p179 = pneg %p178
      // Predicated region
      $region9: #{tpu_custom_call.1} parent=5 // pred_check
        _
      $region10: #{tpu_custom_call.1} parent=5 // pred_check_branch
        %181 = sbr.rel (%p178) target = $region12
      $region11: #{tpu_custom_call.1} parent=5 // pred_region
        %s182 = ssub.s32 %s18, 1
        // Predicated region
        $region13: #{tpu_custom_call.1} parent=11 // pred_check
          %p183 = pneg %p77
        $region14: #{tpu_custom_call.1} parent=11 // pred_check_branch
          %185 = sbr.rel (%p183) target = $region16
        $region15: #{tpu_custom_call.1} parent=11 // pred_region
          _
        $region16: #{tpu_custom_call.1} parent=11 // pred_fallthru
          _
        // Predicated region
        $region17: #{tpu_custom_call.1} parent=11 // pred_check
          %p186 = pneg %p98
        $region18: #{tpu_custom_call.1} parent=11 // pred_check_branch
          %188 = sbr.rel (%p186) target = $region20
        $region19: #{tpu_custom_call.1} parent=11 // pred_region
          %s190 = ssub.s32 1024, 1024
          %191 = vsyncadd [#allocation6], %s190
          %s192 = sshll.u32 [#allocation5], 4
          %s193 = int_to_ptr.vmem [resolvable:$true] %s192
          %198 = dma.hbm_to_vmem [thread:$0]  %s2, 1024, %s193, [#allocation6], 64, 64, 4
        $region20: #{tpu_custom_call.1} parent=11 // pred_fallthru
          _
        // Predicated region
        $region21: #{tpu_custom_call.1} parent=11 // pred_check
          %p199 = pneg %p119
        $region22: #{tpu_custom_call.1} parent=11 // pred_check_branch
          %201 = sbr.rel (%p199) target = $region24
        $region23: #{tpu_custom_call.1} parent=11 // pred_region
          _
        $region24: #{tpu_custom_call.1} parent=11 // pred_fallthru
          _
        // Predicated region
        $region25: #{tpu_custom_call.1} parent=11 // pred_check
          %p202 = pneg %p140
        $region26: #{tpu_custom_call.1} parent=11 // pred_check_branch
          %204 = sbr.rel (%p202) target = $region28
        $region27: #{tpu_custom_call.1} parent=11 // pred_region
          _
        $region28: #{tpu_custom_call.1} parent=11 // pred_fallthru
          _
      $region12: #{tpu_custom_call.1} parent=5 // pred_fallthru
        _
      %p205 = scmp.lt.s32.totalorder %s18, 2
      // Predicated region
      $region29: #{tpu_custom_call.1} parent=5 // pred_check
        %p206 = pneg %p205
      $region30: #{tpu_custom_call.1} parent=5 // pred_check_branch
        %208 = sbr.rel (%p206) target = $region32
      $region31: #{tpu_custom_call.1} parent=5 // pred_region
        // Predicated region
        $region33: #{tpu_custom_call.1} parent=31 // pred_check
          %p209 = pneg %p50
        $region34: #{tpu_custom_call.1} parent=31 // pred_check_branch
          %211 = sbr.rel (%p209) target = $region36
        $region35: #{tpu_custom_call.1} parent=31 // pred_region
          %s212 = sand.u32 %s40, 1
          %s213 = scalar_lea.sflag [#allocation3], %s212
          %s214 = sand.u32 %s40, 1
          %s215 = smul.addr %s214, 8
          %s216 = scalar_lea.vmem [#allocation2], %s215
          %s218 = ssub.s32 128, 128
          %219 = vsyncadd %s213, %s218
          %s220 = smul.addr %s25, 2
          %s221 = smul.addr %s220, 64
          %s222 = scalar_lea.hbm %s0, %s221
          %s223 = sshll.u32 %s216, 4
          %s224 = int_to_ptr.vmem [resolvable:$true] %s223
          %229 = dma.hbm_to_vmem [thread:$0]  %s222, 128, %s224, %s213, 64, 64, 4
        $region36: #{tpu_custom_call.1} parent=31 // pred_fallthru
          _
      $region32: #{tpu_custom_call.1} parent=5 // pred_fallthru
        _
      %p230 = scmp.le.s32.totalorder 1, %s18
      %p231 = scmp.lt.s32.totalorder %s18, 3
      %p232 = pnand %p230, %p231
      %p233 = pneg %p232
      // Predicated region
      $region37: #{tpu_custom_call.1} parent=5 // pred_check
        _
      $region38: #{tpu_custom_call.1} parent=5 // pred_check_branch
        %235 = sbr.rel (%p232) target = $region40
      $region39: #{tpu_custom_call.1} parent=5 // pred_region
        %s236 = ssub.s32 %s18, 1
        %s237 = sand.u32 %s43, 1
        %s238 = scalar_lea.sflag [#allocation3], %s237
        %s239 = sand.u32 %s43, 1
        %s240 = smul.addr %s239, 8
        %s241 = scalar_lea.vmem [#allocation2], %s240
        // Predicated region
        $region41: #{tpu_custom_call.1} parent=39 // pred_check
          %p242 = pneg %p56
        $region42: #{tpu_custom_call.1} parent=39 // pred_check_branch
          %244 = sbr.rel (%p242) target = $region44
        $region43: #{tpu_custom_call.1} parent=39 // pred_region
          %245 = dma.done %s238, 128
        $region44: #{tpu_custom_call.1} parent=39 // pred_fallthru
          _
        // Predicated region
        $region45: #{tpu_custom_call.1} parent=39 // pred_check
          %p246 = pneg %p98
        $region46: #{tpu_custom_call.1} parent=39 // pred_check_branch
          %248 = sbr.rel (%p246) target = $region48
        $region47: #{tpu_custom_call.1} parent=39 // pred_region
          %249 = dma.done [#allocation6], 1024
        $region48: #{tpu_custom_call.1} parent=39 // pred_fallthru
          _
        %s250 = sand.u32 %s43, 1
        %s251 = scalar_lea.sflag [#allocation3], %s250
        %s252 = sand.u32 %s43, 1
        %s253 = smul.addr %s252, 8
        %s254 = scalar_lea.vmem [#allocation2], %s253
        %p255 = pneg %p56
        %p256 = pneg %p53
        %p257 = pneg %p77
        %p258 = pneg %p74
        %p259 = pneg %p98
        %p260 = pneg %p95
        %p261 = pneg %p119
        %p262 = pneg %p116
        %p263 = pneg %p140
        %p264 = pneg %p137
        %p265 = pneg %p168
        %p266 = pneg %p165
        %s267 = sand.u32 %s155, 1
        %s268 = scalar_lea.sflag [#allocation4], %s267
        %s269 = sand.u32 %s155, 1
        %s270 = smul.addr %s269, 8
        %s271 = scalar_lea.vmem [#allocation7], %s270
        %v273 = vld [vmem:[%s3] sm:$0xff]
        %v274 = vld [vmem:[%s3 + $0x8] sm:$0xff]
        %276 = vset.pattern.permute.xlu0 0
        %277 = vperm.xlu0 %276, %v273
        %v278 = vpop.permute.xlu0 %277
        %281 = vset.pattern.permute.xlu0 0
        %282 = vperm.xlu0 %281, %v274
        %v283 = vpop.permute.xlu0 %282
        %v285 = vld [vmem:[%s4] sm:$0xff]
        %v286 = vld [vmem:[%s4 + $0x8] sm:$0xff]
        %288 = vset.pattern.permute.xlu0 0
        %289 = vperm.xlu0 %288, %v285
        %v290 = vpop.permute.xlu0 %289
        %293 = vset.pattern.permute.xlu0 0
        %294 = vperm.xlu0 %293, %v286
        %v295 = vpop.permute.xlu0 %294
        %v297 = vld [vmem:[%s241] sm:$0xf]
        %v298 = vld [vmem:[%s241 + $0x4] sm:$0xf]
        %v299 = vld [vmem:[%s1] sm:$0xf]
        %v300 = vld [vmem:[%s1 + $0x4] sm:$0xf]
        %v303 = vunpack.c.l.b16 %v299
        %v304 = vunpack.c.l.b16 %v300
        %v305 = vpack.c.b16 %v304, %v303
        %v308 = vunpack.c.l.b16 %v297
        %v309 = vunpack.c.l.b16 %v298
        %v310 = vpack.c.b16 %v309, %v308
        %vm312 = vcmask 130048
        %v314 = vsel %vm312, %v305, 0
        %316 = vmatprep.subr.bf16.mxu0 0
        %317 = vmatpush1.bf16.msra.mxu0 0
        %318 = vmatprep.subr.bf16.mxu0 0
        %319 = vmatpush1.bf16.msra.mxu0 0
        %320 = vmatprep.subr.bf16.mxu0 0
        %321 = vmatpush1.bf16.msra.mxu0 0
        %322 = vmatprep.subr.bf16.mxu0 0
        %323 = vmatpush1.bf16.msra.mxu0 0
        %324 = vmatprep.subr.bf16.mxu0 0
        %325 = vmatpush1.bf16.msra.mxu0 0
        %326 = vmatprep.subr.bf16.mxu0 0
        %327 = vmatpush1.bf16.msra.mxu0 0
        %328 = vmatprep.subr.bf16.mxu0 0
        %329 = vmatpush1.bf16.msra.mxu0 0
        %330 = vmatprep.subr.bf16.mxu0 0
        %331 = vmatpush1.bf16.msra.mxu0 %v310
        %332 = vmatprep.subr.bf16.mxu0 0
        %333 = vmatpush2.bf16.msra.mxu0 0
        %334 = vmatprep.subr.bf16.mxu0 0
        %335 = vmatpush2.bf16.msra.mxu0 0
        %336 = vmatprep.subr.bf16.mxu0 0
        %337 = vmatpush2.bf16.msra.mxu0 0
        %338 = vmatprep.subr.bf16.mxu0 0
        %339 = vmatpush2.bf16.msra.mxu0 0
        %340 = vmatprep.subr.bf16.mxu0 0
        %341 = vmatpush2.bf16.msra.mxu0 0
        %342 = vmatprep.subr.bf16.mxu0 0
        %343 = vmatpush2.bf16.msra.mxu0 0
        %344 = vmatprep.subr.bf16.mxu0 0
        %345 = vmatpush2.bf16.msra.mxu0 0
        %346 = vmatprep.subr.bf16.mxu0 0
        %347 = vmatpush2.bf16.msra.mxu0 0
        %348 = vmatprep.mubr.bf16.mxu0 0
        %349 = vmatmul.mubr.bf16.gmra.mxu0 %v314
        %v350 = vpop.f32.mrf.mxu0
        %v351 = vadd.f32 0.0, %v350
        %v352 = vpop.f32.mrf.mxu0
        %v353 = vpop.f32.mrf.mxu0
        %v354 = vadd.f32 0.0, %v353
        %v355 = vpop.f32.mrf.mxu0
        %356 = vdwg.mxu0
        %s357 = scalar_lea.vmem %s1, 24
        %v358 = vld [vmem:[%s357] sm:$0xf]
        %v359 = vld [vmem:[%s357 + $0x4] sm:$0xf]
        %s360 = scalar_lea.vmem %s1, 16
        %v361 = vld [vmem:[%s360] sm:$0xf]
        %v362 = vld [vmem:[%s360 + $0x4] sm:$0xf]
        %v365 = vunpack.c.l.b16 %v361
        %v366 = vunpack.c.l.b16 %v362
        %v367 = vpack.c.b16 %v366, %v365
        %368 = vrot.lane.b32.xlu0 %v310, 127
        %v369 = vpop.permute.xlu0 %368
        %v372 = vsel %vm312, %v367, 0
        %374 = vmatprep.subr.bf16.mxu0 0
        %375 = vmatpush1.bf16.msra.mxu0 0
        %376 = vmatprep.subr.bf16.mxu0 0
        %377 = vmatpush1.bf16.msra.mxu0 0
        %378 = vmatprep.subr.bf16.mxu0 0
        %379 = vmatpush1.bf16.msra.mxu0 0
        %380 = vmatprep.subr.bf16.mxu0 0
        %381 = vmatpush1.bf16.msra.mxu0 0
        %382 = vmatprep.subr.bf16.mxu0 0
        %383 = vmatpush1.bf16.msra.mxu0 0
        %384 = vmatprep.subr.bf16.mxu0 0
        %385 = vmatpush1.bf16.msra.mxu0 0
        %386 = vmatprep.subr.bf16.mxu0 0
        %387 = vmatpush1.bf16.msra.mxu0 0
        %388 = vmatprep.subr.bf16.mxu0 0
        %389 = vmatpush1.bf16.msra.mxu0 %v369
        %390 = vmatprep.subr.bf16.mxu0 0
        %391 = vmatpush2.bf16.msra.mxu0 0
        %392 = vmatprep.subr.bf16.mxu0 0
        %393 = vmatpush2.bf16.msra.mxu0 0
        %394 = vmatprep.subr.bf16.mxu0 0
        %395 = vmatpush2.bf16.msra.mxu0 0
        %396 = vmatprep.subr.bf16.mxu0 0
        %397 = vmatpush2.bf16.msra.mxu0 0
        %398 = vmatprep.subr.bf16.mxu0 0
        %399 = vmatpush2.bf16.msra.mxu0 0
        %400 = vmatprep.subr.bf16.mxu0 0
        %401 = vmatpush2.bf16.msra.mxu0 0
        %402 = vmatprep.subr.bf16.mxu0 0
        %403 = vmatpush2.bf16.msra.mxu0 0
        %404 = vmatprep.subr.bf16.mxu0 0
        %405 = vmatpush2.bf16.msra.mxu0 0
        %406 = vmatprep.mubr.bf16.mxu0 0
        %407 = vmatmul.mubr.bf16.gmra.mxu0 %v372
        %v408 = vpop.f32.mrf.mxu0
        %v409 = vadd.f32 0.0, %v408
        %v410 = vpop.f32.mrf.mxu0
        %v411 = vpop.f32.mrf.mxu0
        %v412 = vadd.f32 0.0, %v411
        %v413 = vpop.f32.mrf.mxu0
        %414 = vdwg.mxu0
        %v417 = vunpack.c.l.b16 %v358
        %v418 = vunpack.c.l.b16 %v359
        %v419 = vpack.c.b16 %v418, %v417
        %v421 = vsel %vm312, %v419, 0
        %423 = vmatprep.subr.bf16.mxu0 0
        %424 = vmatpush1.bf16.msra.mxu0 0
        %425 = vmatprep.subr.bf16.mxu0 0
        %426 = vmatpush1.bf16.msra.mxu0 0
        %427 = vmatprep.subr.bf16.mxu0 0
        %428 = vmatpush1.bf16.msra.mxu0 0
        %429 = vmatprep.subr.bf16.mxu0 0
        %430 = vmatpush1.bf16.msra.mxu0 0
        %431 = vmatprep.subr.bf16.mxu0 0
        %432 = vmatpush1.bf16.msra.mxu0 0
        %433 = vmatprep.subr.bf16.mxu0 0
        %434 = vmatpush1.bf16.msra.mxu0 0
        %435 = vmatprep.subr.bf16.mxu0 0
        %436 = vmatpush1.bf16.msra.mxu0 0
        %437 = vmatprep.subr.bf16.mxu0 0
        %438 = vmatpush1.bf16.msra.mxu0 %v310
        %439 = vmatprep.subr.bf16.mxu0 0
        %440 = vmatpush2.bf16.msra.mxu0 0
        %441 = vmatprep.subr.bf16.mxu0 0
        %442 = vmatpush2.bf16.msra.mxu0 0
        %443 = vmatprep.subr.bf16.mxu0 0
        %444 = vmatpush2.bf16.msra.mxu0 0
        %445 = vmatprep.subr.bf16.mxu0 0
        %446 = vmatpush2.bf16.msra.mxu0 0
        %447 = vmatprep.subr.bf16.mxu0 0
        %448 = vmatpush2.bf16.msra.mxu0 0
        %449 = vmatprep.subr.bf16.mxu0 0
        %450 = vmatpush2.bf16.msra.mxu0 0
        %451 = vmatprep.subr.bf16.mxu0 0
        %452 = vmatpush2.bf16.msra.mxu0 0
        %453 = vmatprep.subr.bf16.mxu0 0
        %454 = vmatpush2.bf16.msra.mxu0 0
        %455 = vmatprep.mubr.bf16.mxu0 0
        %456 = vmatmul.mubr.bf16.gmra.mxu0 %v421
        %v457 = vpop.f32.mrf.mxu0
        %v458 = vadd.f32 %v409, %v457
        %v459 = vpop.f32.mrf.mxu0
        %v460 = vpop.f32.mrf.mxu0
        %v461 = vadd.f32 %v412, %v460
        %v462 = vpop.f32.mrf.mxu0
        %463 = vdwg.mxu0
        %v464 = vmul.f32 %v351, %v278
        %v465 = vmul.f32 %v354, %v283
        %v466 = vadd.f32 %v464, %v290
        %v467 = vadd.f32 %v465, %v295
        %v468 = vmax.f32 %v466, 0.0
        %v469 = vmax.f32 %v467, 0.0
        %v470 = vpack.c.bf16 %v469, %v468
        %v471 = vld [vmem:[#allocation5] sm:$0xf]
        %v472 = vld [vmem:[#allocation5 + $0x4] sm:$0xf]
        %v473 = vld [vmem:[#allocation5 + $0x8] sm:$0xf]
        %v474 = vld [vmem:[#allocation5 + $0xc] sm:$0xf]
        %v475 = vld [vmem:[#allocation5 + $0x10] sm:$0xf]
        %v476 = vld [vmem:[#allocation5 + $0x14] sm:$0xf]
        %v477 = vld [vmem:[#allocation5 + $0x18] sm:$0xf]
        %v478 = vld [vmem:[#allocation5 + $0x1c] sm:$0xf]
        %v479 = vmul.f32 %v458, %v278
        %v480 = vmul.f32 %v461, %v283
        %v481 = vadd.f32 %v479, %v290
        %v482 = vadd.f32 %v480, %v295
        %v483 = vmax.f32 %v481, 0.0
        %v484 = vmax.f32 %v482, 0.0
        %v485 = vpack.c.bf16 %v484, %v483
        %s486 = scalar_lea.vmem [#allocation5], 32
        %v487 = vld [vmem:[%s486] sm:$0xf]
        %v488 = vld [vmem:[%s486 + $0x4] sm:$0xf]
        %v489 = vld [vmem:[%s486 + $0x8] sm:$0xf]
        %v490 = vld [vmem:[%s486 + $0xc] sm:$0xf]
        %v491 = vld [vmem:[%s486 + $0x10] sm:$0xf]
        %v492 = vld [vmem:[%s486 + $0x14] sm:$0xf]
        %v493 = vld [vmem:[%s486 + $0x18] sm:$0xf]
        %v494 = vld [vmem:[%s486 + $0x1c] sm:$0xf]
        %v503 = vunpack.c.l.b16 %v487
        %v504 = vunpack.c.l.b16 %v488
        %v505 = vunpack.c.l.b16 %v489
        %v506 = vunpack.c.l.b16 %v490
        %v507 = vunpack.c.l.b16 %v491
        %v508 = vunpack.c.l.b16 %v492
        %v509 = vunpack.c.l.b16 %v493
        %v510 = vunpack.c.l.b16 %v494
        %v511 = vpack.c.b16 %v504, %v503
        %v512 = vpack.c.b16 %v506, %v505
        %v513 = vpack.c.b16 %v508, %v507
        %v514 = vpack.c.b16 %v510, %v509
        %vm519 = vcmask 523264
        %v521 = vsel %vm519, %v485, 0
        %523 = vmatprep.subr.bf16.mxu0 0
        %524 = vmatpush1.bf16.msra.mxu0 0
        %525 = vmatprep.subr.bf16.mxu0 0
        %526 = vmatpush1.bf16.msra.mxu0 0
        %527 = vmatprep.subr.bf16.mxu0 0
        %528 = vmatpush1.bf16.msra.mxu0 0
        %529 = vmatprep.subr.bf16.mxu0 0
        %530 = vmatpush1.bf16.msra.mxu0 0
        %531 = vmatprep.subr.bf16.mxu0 0
        %532 = vmatpush1.bf16.msra.mxu0 %v514
        %533 = vmatprep.subr.bf16.mxu0 0
        %534 = vmatpush1.bf16.msra.mxu0 %v513
        %535 = vmatprep.subr.bf16.mxu0 0
        %536 = vmatpush1.bf16.msra.mxu0 %v512
        %537 = vmatprep.subr.bf16.mxu0 0
        %538 = vmatpush1.bf16.msra.mxu0 %v511
        %539 = vmatprep.subr.bf16.mxu0 0
        %540 = vmatpush2.bf16.msra.mxu0 0
        %541 = vmatprep.subr.bf16.mxu0 0
        %542 = vmatpush2.bf16.msra.mxu0 0
        %543 = vmatprep.subr.bf16.mxu0 0
        %544 = vmatpush2.bf16.msra.mxu0 0
        %545 = vmatprep.subr.bf16.mxu0 0
        %546 = vmatpush2.bf16.msra.mxu0 0
        %547 = vmatprep.subr.bf16.mxu0 0
        %548 = vmatpush2.bf16.msra.mxu0 0
        %549 = vmatprep.subr.bf16.mxu0 0
        %550 = vmatpush2.bf16.msra.mxu0 0
        %551 = vmatprep.subr.bf16.mxu0 0
        %552 = vmatpush2.bf16.msra.mxu0 0
        %553 = vmatprep.subr.bf16.mxu0 0
        %554 = vmatpush2.bf16.msra.mxu0 0
        %555 = vmatprep.mubr.bf16.mxu0 0
        %556 = vmatmul.mubr.bf16.gmra.mxu0 %v521
        %v557 = vpop.f32.mrf.mxu0
        %v558 = vadd.f32 0.0, %v557
        %v559 = vpop.f32.mrf.mxu0
        %v560 = vpop.f32.mrf.mxu0
        %v561 = vadd.f32 0.0, %v560
        %v562 = vpop.f32.mrf.mxu0
        %563 = vdwg.mxu0
        %v572 = vunpack.c.l.b16 %v471
        %v573 = vunpack.c.l.b16 %v472
        %v574 = vunpack.c.l.b16 %v473
        %v575 = vunpack.c.l.b16 %v474
        %v576 = vunpack.c.l.b16 %v475
        %v577 = vunpack.c.l.b16 %v476
        %v578 = vunpack.c.l.b16 %v477
        %v579 = vunpack.c.l.b16 %v478
        %v580 = vpack.c.b16 %v573, %v572
        %v581 = vpack.c.b16 %v575, %v574
        %v582 = vpack.c.b16 %v577, %v576
        %v583 = vpack.c.b16 %v579, %v578
        %v589 = vsel %vm519, %v470, 0
        %591 = vmatprep.subr.bf16.mxu0 0
        %592 = vmatpush1.bf16.msra.mxu0 0
        %593 = vmatprep.subr.bf16.mxu0 0
        %594 = vmatpush1.bf16.msra.mxu0 0
        %595 = vmatprep.subr.bf16.mxu0 0
        %596 = vmatpush1.bf16.msra.mxu0 0
        %597 = vmatprep.subr.bf16.mxu0 0
        %598 = vmatpush1.bf16.msra.mxu0 0
        %599 = vmatprep.subr.bf16.mxu0 0
        %600 = vmatpush1.bf16.msra.mxu0 %v583
        %601 = vmatprep.subr.bf16.mxu0 0
        %602 = vmatpush1.bf16.msra.mxu0 %v582
        %603 = vmatprep.subr.bf16.mxu0 0
        %604 = vmatpush1.bf16.msra.mxu0 %v581
        %605 = vmatprep.subr.bf16.mxu0 0
        %606 = vmatpush1.bf16.msra.mxu0 %v580
        %607 = vmatprep.subr.bf16.mxu0 0
        %608 = vmatpush2.bf16.msra.mxu0 0
        %609 = vmatprep.subr.bf16.mxu0 0
        %610 = vmatpush2.bf16.msra.mxu0 0
        %611 = vmatprep.subr.bf16.mxu0 0
        %612 = vmatpush2.bf16.msra.mxu0 0
        %613 = vmatprep.subr.bf16.mxu0 0
        %614 = vmatpush2.bf16.msra.mxu0 0
        %615 = vmatprep.subr.bf16.mxu0 0
        %616 = vmatpush2.bf16.msra.mxu0 0
        %617 = vmatprep.subr.bf16.mxu0 0
        %618 = vmatpush2.bf16.msra.mxu0 0
        %619 = vmatprep.subr.bf16.mxu0 0
        %620 = vmatpush2.bf16.msra.mxu0 0
        %621 = vmatprep.subr.bf16.mxu0 0
        %622 = vmatpush2.bf16.msra.mxu0 0
        %623 = vmatprep.mubr.bf16.mxu0 0
        %624 = vmatmul.mubr.bf16.gmra.mxu0 %v589
        %v625 = vpop.f32.mrf.mxu0
        %v626 = vadd.f32 %v558, %v625
        %v627 = vpop.f32.mrf.mxu0
        %v628 = vpop.f32.mrf.mxu0
        %v629 = vadd.f32 %v561, %v628
        %v630 = vpop.f32.mrf.mxu0
        %631 = vdwg.mxu0
        %v632 = vpack.c.bf16 %v629, %v626
        %v634 = vunpack.c.l.b16 %v632
        %v635 = vunpack.c.h.b16 %v632
        %v636 = vpack.c.b16 %v634, %v634
        %v637 = vpack.c.b16 %v635, %v635
        %640 = vst [vmem:[%s271] sm:$0xf] %v636
        %641 = vst [vmem:[%s271 + $0x4] sm:$0xf] %v637
        %s642 = sand.u32 %s155, 1
        %s643 = scalar_lea.sflag [#allocation4], %s642
        %s644 = sand.u32 %s155, 1
        %s645 = smul.addr %s644, 8
        %s646 = scalar_lea.vmem [#allocation7], %s645
        // Predicated region
        $region49: #{tpu_custom_call.1} parent=39 // pred_check
          %p647 = pneg %p165
        $region50: #{tpu_custom_call.1} parent=39 // pred_check_branch
          %649 = sbr.rel (%p647) target = $region52
        $region51: #{tpu_custom_call.1} parent=39 // pred_region
          %s651 = ssub.s32 128, 128
          %652 = vsyncadd %s643, %s651
          %s653 = smul.addr %s27, 2
          %s654 = sadd.s32 %s28, %s653
          %s655 = smul.addr %s654, 64
          %s656 = scalar_lea.hbm %s5, %s655
          %s657 = sshll.u32 %s646, 4
          %s658 = int_to_ptr.vmem [resolvable:$true] %s657
          %663 = dma.vmem_to_hbm [thread:$0]  %s658, 128, %s656, %s643, 64, 64, 4
        $region52: #{tpu_custom_call.1} parent=39 // pred_fallthru
          _
      $region40: #{tpu_custom_call.1} parent=5 // pred_fallthru
        _
      %p664 = scmp.le.s32.totalorder 2, %s18
      // Predicated region
      $region53: #{tpu_custom_call.1} parent=5 // pred_check
        %p665 = pneg %p664
      $region54: #{tpu_custom_call.1} parent=5 // pred_check_branch
        %667 = sbr.rel (%p665) target = $region56
      $region55: #{tpu_custom_call.1} parent=5 // pred_region
        %s668 = ssub.s32 %s18, 2
        // Predicated region
        $region57: #{tpu_custom_call.1} parent=55 // pred_check
          %p669 = pneg %p171
        $region58: #{tpu_custom_call.1} parent=55 // pred_check_branch
          %671 = sbr.rel (%p669) target = $region60
        $region59: #{tpu_custom_call.1} parent=55 // pred_region
          %s672 = sand.u32 %s156, 1
          %s673 = scalar_lea.sflag [#allocation4], %s672
          %s674 = sand.u32 %s156, 1
          %s675 = smul.addr %s674, 8
          %s676 = scalar_lea.vmem [#allocation7], %s675
          %677 = dma.done %s673, 128
        $region60: #{tpu_custom_call.1} parent=55 // pred_fallthru
          _
      $region56: #{tpu_custom_call.1} parent=5 // pred_fallthru
        _
    $region6: #{tpu_custom_call.1} parent=1 // loop_footer
      %s22 = sadd.s32 1, %s18
    $region7: #{tpu_custom_call.1} parent=1 // loop_footer_branch
      %17 = sbr.rel target = $region3
    $region8: #{tpu_custom_call.1} parent=1 // loop_exit
      _
    %678 = vsyncpa [#allocation3], 1
    %s679 = scalar_lea.sflag [#allocation3], 1
    %680 = vsyncpa %s679, 1
    %681 = vsyncpa [#allocation6], 1
    %682 = vsyncpa [#allocation4], 1
    %s683 = scalar_lea.sflag [#allocation4], 1
    %684 = vsyncpa %s683, 1

</llo_original>
